<compile_context>
chip_gen: v6e
topology: v6e:2x2x1
jax: 0.10.0
libtpu: 0.0.40
codegen_flags: <defaults>
</compile_context>

<pallas_src>
import functools
import math

import numpy as np
import jax
import jax.numpy as jnp
from jax.experimental import pallas as pl
from jax.experimental.pallas import tpu as pltpu


_VMEM_LIMIT = 48 * 1024 * 1024   # safe on v5e/v6e (128 MiB) and v7x (64 MiB)


def _pick_tile(dim, pref, align):
    """Largest tile <= pref that divides `dim` and is a multiple of `align`;
    falls back to the full dim (full-extent blocks are always layout-legal)."""
    if dim <= pref:
        return dim
    t = (pref // align) * align
    while t >= align:
        if dim % t == 0:
            return t
        t -= align
    return dim


# ---------------------------------------------------------------------------
# Kernel 1: fused LayerNorm -> Linear (+ optional GeLU).
#   grid (M/tm, N/tn); the feature (K) axis is kept whole so mean/var are
#   exact.  LN math in f32, MXU operands bf16, f32 accumulation.
# ---------------------------------------------------------------------------
def _ln_linear_kernel(x_ref, g_ref, b_ref, w_ref, bias_ref, o_ref, *, activation):
    x = x_ref[...].astype(jnp.float32)
    mu = jnp.mean(x, axis=-1, keepdims=True)
    var = jnp.mean(jnp.square(x - mu), axis=-1, keepdims=True)
    xn = (x - mu) * jax.lax.rsqrt(var + 1e-5) * g_ref[...] + b_ref[...]
    acc = jnp.dot(xn.astype(jnp.bfloat16), w_ref[...],
                  preferred_element_type=jnp.float32)
    acc = acc + bias_ref[...]
    if activation == "gelu":
        acc = jax.nn.gelu(acc)
    o_ref[...] = acc.astype(o_ref.dtype)


def ln_linear(x, g, b, w, bias, activation=None, out_dtype=jnp.bfloat16,
              tm_pref=256, tn_pref=256):
    M, K = x.shape
    N = w.shape[1]
    tm = _pick_tile(M, tm_pref, 8)
    tn = _pick_tile(N, tn_pref, 128)
    return pl.pallas_call(
        functools.partial(_ln_linear_kernel, activation=activation),
        out_shape=jax.ShapeDtypeStruct((M, N), out_dtype),
        grid=(M // tm, N // tn),
        in_specs=[
            pl.BlockSpec((tm, K), lambda i, j: (i, 0)),
            pl.BlockSpec((1, K), lambda i, j: (0, 0)),
            pl.BlockSpec((1, K), lambda i, j: (0, 0)),
            pl.BlockSpec((K, tn), lambda i, j: (0, j)),
            pl.BlockSpec((1, tn), lambda i, j: (0, j)),
        ],
        out_specs=pl.BlockSpec((tm, tn), lambda i, j: (i, j)),
        compiler_params=pltpu.CompilerParams(
            dimension_semantics=("parallel", "parallel"),
            vmem_limit_bytes=_VMEM_LIMIT),
    )(x, g.reshape(1, K), b.reshape(1, K), w, bias.reshape(1, N))


# ---------------------------------------------------------------------------
# Kernel 2: tiled linear with K-axis accumulation and optional fused residual.
#   grid (M/tm, N/tn, K/tk), K innermost/'arbitrary', f32 VMEM accumulator.
# ---------------------------------------------------------------------------
def _matmul_kernel(x_ref, w_ref, bias_ref, *rest, activation, nk, has_residual):
    if has_residual:
        r_ref, o_ref, acc_ref = rest
    else:
        o_ref, acc_ref = rest

    @pl.when(pl.program_id(2) == 0)
    def _():
        acc_ref[...] = jnp.zeros_like(acc_ref)

    acc_ref[...] += jnp.dot(x_ref[...].astype(jnp.bfloat16),
                            w_ref[...].astype(jnp.bfloat16),
                            preferred_element_type=jnp.float32)

    @pl.when(pl.program_id(2) == nk - 1)
    def _():
        y = acc_ref[...] + bias_ref[...]
        if activation == "gelu":
            y = jax.nn.gelu(y)
        if has_residual:
            y = y + r_ref[...].astype(jnp.float32)
        o_ref[...] = y.astype(o_ref.dtype)


def tiled_linear(x, w, bias, residual=None, activation=None,
                 out_dtype=jnp.float32, tm_pref=256, tn_pref=256, tk_pref=512):
    M, K = x.shape
    N = w.shape[1]
    tm = _pick_tile(M, tm_pref, 8)
    tn = _pick_tile(N, tn_pref, 128)
    tk = _pick_tile(K, tk_pref, 128)
    nm, nn, nk = M // tm, N // tn, K // tk
    in_specs = [
        pl.BlockSpec((tm, tk), lambda i, j, k: (i, k)),
        pl.BlockSpec((tk, tn), lambda i, j, k: (k, j)),
        pl.BlockSpec((1, tn), lambda i, j, k: (0, j)),
    ]
    args = [x, w, bias.reshape(1, N)]
    if residual is not None:
        in_specs.append(pl.BlockSpec((tm, tn), lambda i, j, k: (i, j)))
        args.append(residual)
    return pl.pallas_call(
        functools.partial(_matmul_kernel, activation=activation, nk=nk,
                          has_residual=residual is not None),
        out_shape=jax.ShapeDtypeStruct((M, N), out_dtype),
        grid=(nm, nn, nk),
        in_specs=in_specs,
        out_specs=pl.BlockSpec((tm, tn), lambda i, j, k: (i, j)),
        scratch_shapes=[pltpu.VMEM((tm, tn), jnp.float32)],
        compiler_params=pltpu.CompilerParams(
            dimension_semantics=("parallel", "parallel", "arbitrary"),
            vmem_limit_bytes=_VMEM_LIMIT),
    )(*args)


# ---------------------------------------------------------------------------
# Kernel 3: flash-style attention with in-kernel causal+padding mask and head
# grouping.  qkv is the fused (B, Lp, 3*D) activation; q/k/v head-group slices
# are selected purely via BlockSpec index_maps (no JAX transposes).
# ---------------------------------------------------------------------------
def _flash_attn_kernel(q_ref, k_ref, v_ref, mask_ref, o_ref,
                       m_sc, l_sc, acc_sc, *, scale, g, hd, tq, tkv, nkv):
    qi = pl.program_id(2)
    ki = pl.program_id(3)

    @pl.when(ki == 0)
    def _():
        m_sc[...] = jnp.full_like(m_sc, -jnp.inf)
        l_sc[...] = jnp.zeros_like(l_sc)
        acc_sc[...] = jnp.zeros_like(acc_sc)

    # causal + key-padding bias built in-kernel (no (B,L,L) HBM tensor).
    qpos = qi * tq + jax.lax.broadcasted_iota(jnp.int32, (tq, tkv), 0)
    kpos = ki * tkv + jax.lax.broadcasted_iota(jnp.int32, (tq, tkv), 1)
    keymask = mask_ref[0]                           # (1, tkv) f32
    allowed = (kpos <= qpos) & (keymask > 0.5)
    bias = jnp.where(allowed, 0.0, -1e9).astype(jnp.float32)

    q = q_ref[0]                                    # (tq, g*hd) bf16
    k = k_ref[0]
    v = v_ref[0]
    for h in range(g):                              # unrolled over the head group
        sl = slice(h * hd, (h + 1) * hd)
        s = jax.lax.dot_general(q[:, sl], k[:, sl], (((1,), (1,)), ((), ())),
                                preferred_element_type=jnp.float32)
        s = s * scale + bias
        m_prev = m_sc[h]
        m_new = jnp.maximum(m_prev, jnp.max(s, axis=-1, keepdims=True))
        alpha = jnp.exp(m_prev - m_new)
        p = jnp.exp(s - m_new)
        l_sc[h] = alpha * l_sc[h] + jnp.sum(p, axis=-1, keepdims=True)
        acc_sc[h] = alpha * acc_sc[h] + jnp.dot(
            p.astype(jnp.bfloat16), v[:, sl], preferred_element_type=jnp.float32)
        m_sc[h] = m_new

    @pl.when(ki == nkv - 1)
    def _():
        for h in range(g):
            sl = slice(h * hd, (h + 1) * hd)
            inv = pl.reciprocal(l_sc[h], approx=True)
            o_ref[0, :, sl] = (acc_sc[h] * inv).astype(o_ref.dtype)


def flash_attention(qkv, key_mask, n_head, head_dim):
    """qkv: (B, Lp, 3*D) bf16 with columns [Q_h0..Q_h{H-1} | K... | V...];
    key_mask: (B, 1, Lp) f32.  Returns (B, Lp, D) bf16 (heads concatenated)."""
    B, Lp, threeD = qkv.shape
    D = threeD // 3
    assert D == n_head * head_dim and D % 128 == 0
    assert Lp <= 128 or Lp % 128 == 0
    scale = 1.0 / math.sqrt(head_dim)
    # smallest head group whose lane width is a multiple of 128
    g = n_head
    for cand in range(1, n_head + 1):
        if n_head % cand == 0 and (cand * head_dim) % 128 == 0:
            g = cand
            break
    hg = n_head // g
    gw = g * head_dim
    tq = Lp if Lp <= 128 else 128
    tkv = Lp if Lp <= 128 else 128
    nq, nkv = Lp // tq, Lp // tkv
    kernel = functools.partial(_flash_attn_kernel, scale=scale, g=g,
                               hd=head_dim, tq=tq, tkv=tkv, nkv=nkv)
    return pl.pallas_call(
        kernel,
        out_shape=jax.ShapeDtypeStruct((B, Lp, D), jnp.bfloat16),
        grid=(B, hg, nq, nkv),
        in_specs=[
            pl.BlockSpec((1, tq, gw), lambda b, h, qi, ki: (b, qi, h)),
            pl.BlockSpec((1, tkv, gw), lambda b, h, qi, ki: (b, ki, hg + h)),
            pl.BlockSpec((1, tkv, gw), lambda b, h, qi, ki: (b, ki, 2 * hg + h)),
            pl.BlockSpec((1, 1, tkv), lambda b, h, qi, ki: (b, 0, ki)),
        ],
        out_specs=pl.BlockSpec((1, tq, gw), lambda b, h, qi, ki: (b, qi, h)),
        scratch_shapes=[
            pltpu.VMEM((g, tq, 1), jnp.float32),           # running max
            pltpu.VMEM((g, tq, 1), jnp.float32),           # running sum
            pltpu.VMEM((g, tq, head_dim), jnp.float32),    # running output
        ],
        compiler_params=pltpu.CompilerParams(
            dimension_semantics=("parallel", "parallel", "parallel", "arbitrary"),
            vmem_limit_bytes=_VMEM_LIMIT),
    )(qkv, qkv, qkv, key_mask)


# ---------------------------------------------------------------------------
# Kernel 4: fused final-LN + LM head + masked cross-entropy.
#   grid (rows/tm, vocab/tv); vocab innermost/'arbitrary' with an online
#   logsumexp and tile-aware target-logit accumulator.  (B,T,V) logits never
#   touch HBM; per-row masked loss is the only output.
# ---------------------------------------------------------------------------
def _lmhead_ce_kernel(x_ref, g_ref, b_ref, w_ref, bias_ref, tgt_ref, mask_ref,
                      loss_ref, m_sc, l_sc, t_sc, xn_sc, *, tv, nv):
    j = pl.program_id(1)

    @pl.when(j == 0)
    def _():
        m_sc[...] = jnp.full_like(m_sc, -jnp.inf)
        l_sc[...] = jnp.zeros_like(l_sc)
        t_sc[...] = jnp.zeros_like(t_sc)
        x = x_ref[...].astype(jnp.float32)
        mu = jnp.mean(x, axis=-1, keepdims=True)
        var = jnp.mean(jnp.square(x - mu), axis=-1, keepdims=True)
        xn = (x - mu) * jax.lax.rsqrt(var + 1e-5) * g_ref[...] + b_ref[...]
        xn_sc[...] = xn.astype(jnp.bfloat16)

    logits = jnp.dot(xn_sc[...], w_ref[...],
                     preferred_element_type=jnp.float32) + bias_ref[...]
    m_new = jnp.maximum(m_sc[...], jnp.max(logits, axis=-1, keepdims=True))
    alpha = jnp.exp(m_sc[...] - m_new)
    l_sc[...] = alpha * l_sc[...] + jnp.sum(jnp.exp(logits - m_new),
                                            axis=-1, keepdims=True)
    m_sc[...] = m_new
    # tile-aware one-hot gather of the target logit
    vocab_ids = j * tv + jax.lax.broadcasted_iota(jnp.int32, logits.shape, 1)
    t_sc[...] += jnp.sum(jnp.where(vocab_ids == tgt_ref[...], logits, 0.0),
                         axis=-1, keepdims=True)

    @pl.when(j == nv - 1)
    def _():
        lse = m_sc[...] + jnp.log(l_sc[...])
        loss_ref[...] = (lse - t_sc[...]) * mask_ref[...]


def fused_lmhead_ce(h_rows, ln_g, ln_b, w, bias, target, mask,
                    tm_pref=256, tv_pref=256):
    M, D = h_rows.shape
    V = w.shape[1]
    tm = _pick_tile(M, tm_pref, 8)
    tv = _pick_tile(V, tv_pref, 128)
    nm, nv = M // tm, V // tv
    per_row = pl.pallas_call(
        functools.partial(_lmhead_ce_kernel, tv=tv, nv=nv),
        out_shape=jax.ShapeDtypeStruct((M, 1), jnp.float32),
        grid=(nm, nv),
        in_specs=[
            pl.BlockSpec((tm, D), lambda i, j: (i, 0)),
            pl.BlockSpec((1, D), lambda i, j: (0, 0)),
            pl.BlockSpec((1, D), lambda i, j: (0, 0)),
            pl.BlockSpec((D, tv), lambda i, j: (0, j)),
            pl.BlockSpec((1, tv), lambda i, j: (0, j)),
            pl.BlockSpec((tm, 1), lambda i, j: (i, 0)),
            pl.BlockSpec((tm, 1), lambda i, j: (i, 0)),
        ],
        out_specs=pl.BlockSpec((tm, 1), lambda i, j: (i, 0)),
        scratch_shapes=[
            pltpu.VMEM((tm, 1), jnp.float32),      # running max
            pltpu.VMEM((tm, 1), jnp.float32),      # running sum(exp)
            pltpu.VMEM((tm, 1), jnp.float32),      # target logit
            pltpu.VMEM((tm, D), jnp.bfloat16),     # layernormed row block
        ],
        compiler_params=pltpu.CompilerParams(
            dimension_semantics=("parallel", "arbitrary"),
            vmem_limit_bytes=_VMEM_LIMIT),
    )(h_rows, ln_g.reshape(1, D), ln_b.reshape(1, D), w, bias.reshape(1, V),
      target.reshape(M, 1).astype(jnp.int32),
      mask.reshape(M, 1).astype(jnp.float32))
    num = jnp.sum(per_row)
    den = jnp.sum(mask.astype(jnp.float32) + 1e-6)   # torch: sum(mask + 1e-6)
    return 5.0 * num / den                           # 5 * loss_response(...)


# ---------------------------------------------------------------------------
# Synthetic causal decoder (replaces AutoModelForCausalLM)
# ---------------------------------------------------------------------------
def transformer_core(params, inputs_embeds, attention_mask):
    """inputs_embeds: (B, Lp, D) f32; attention_mask: (B, Lp) in {0,1}.
    Returns the final pre-ln_f hidden states (B, Lp, D) f32."""
    B, Lp, D = inputs_embeds.shape
    H = params["n_head"]
    hd = D // H
    key_mask = attention_mask.reshape(B, 1, Lp).astype(jnp.float32)

    h = inputs_embeds.astype(jnp.float32).reshape(B * Lp, D)
    for layer in params["layers"]:
        # fused LN1 + QKV projection (bf16 out, layout [Q heads | K heads | V heads])
        qkv = ln_linear(h, layer["ln1_g"], layer["ln1_b"],
                        layer["w_qkv"], layer["b_qkv"], out_dtype=jnp.bfloat16)
        attn = flash_attention(qkv.reshape(B, Lp, 3 * D), key_mask, H, hd)
        # attn output is already (B, Lp, H*hd) head-concatenated: no transpose
        h = tiled_linear(attn.reshape(B * Lp, D), layer["w_attn_out"],
                         layer["b_attn_out"], residual=h, out_dtype=jnp.float32)
        mlp = ln_linear(h, layer["ln2_g"], layer["ln2_b"],
                        layer["w_fc"], layer["b_fc"], activation="gelu",
                        out_dtype=jnp.bfloat16)
        h = tiled_linear(mlp, layer["w_mlp_out"], layer["b_mlp_out"],
                         residual=h, out_dtype=jnp.float32)
    return h.reshape(B, Lp, D)


# ---------------------------------------------------------------------------
# llm_backbone forward (training path)
# ---------------------------------------------------------------------------
def _proj(x, w, b):
    # TODO(synk): SceneProj/ClickProj/... internals are not given; modeled as Linear.
    Bx, Tx, Kx = x.shape
    y = tiled_linear(x.reshape(Bx * Tx, Kx), w, b, out_dtype=jnp.float32)
    return y.reshape(Bx, Tx, w.shape[1])


def llm_backbone_forward(params, output, inputs):
    output = dict(output)
    # _prepare_representations
    output["scene_features"] = _proj(output["scene_features"],
                                     params["scene_proj_w"], params["scene_proj_b"])
    output["shape_features"] = _proj(output["shape_features"],
                                     params["shape_proj_w"], params["shape_proj_b"])
    output["click_features"] = _proj(inputs["click"],
                                     params["click_proj_w"], params["click_proj_b"])
    output["image_features"] = _proj(output["image_features"],
                                     params["image_proj_w"], params["image_proj_b"])
    output["region_features"] = _proj(inputs["region"],
                                      params["region_proj_w"], params["region_proj_b"])

    scene_f = output["scene_features"]
    image_f = output["image_features"]
    shape_f = output["shape_features"]
    click_f = output["click_features"]
    region_f = output["region_features"]

    total_ids = inputs["total_ids"].astype(jnp.int32)
    text_mask = inputs["total_mask"].astype(jnp.float32)
    gradient_mask = inputs["answer_mask"].astype(jnp.float32)
    click_mask = jnp.tile(inputs["click_mask"].astype(jnp.float32), (1, click_f.shape[1]))
    image_mask = jnp.tile(inputs["image_mask"].astype(jnp.float32), (1, image_f.shape[1]))
    shape_mask = jnp.tile(inputs["shape_mask"].astype(jnp.float32), (1, shape_f.shape[1]))
    region_mask = jnp.tile(inputs["region_mask"].astype(jnp.float32), (1, region_f.shape[1]))

    prefix_tokens = jnp.concatenate(
        [scene_f, image_f, shape_f, click_f, region_f], axis=1)
    prefix_mask = jnp.concatenate(
        [jnp.ones_like(scene_f[..., 0]), image_mask, shape_mask, click_mask, region_mask],
        axis=1)

    tok_embeds = jnp.take(params["wte"], total_ids, axis=0)          # glue: gather
    inputs_embeds = jnp.concatenate([prefix_tokens, tok_embeds], axis=1)
    attention_mask = jnp.concatenate([prefix_mask, text_mask], axis=1)

    B, L, _ = inputs_embeds.shape
    P = prefix_tokens.shape[1]
    T = total_ids.shape[1]

    # pad the sequence so attention / linear tiles satisfy (8,128) layout rules;
    # padded positions are key-masked and never read by the loss.
    align = 8 if L <= 128 else 128
    Lp = ((L + align - 1) // align) * align
    if Lp != L:
        inputs_embeds = jnp.pad(inputs_embeds, ((0, 0), (0, Lp - L), (0, 0)))
        attention_mask = jnp.pad(attention_mask, ((0, 0), (0, Lp - L)))

    h = transformer_core(params, inputs_embeds, attention_mask)      # (B, Lp, D)

    # rows feeding the loss = logits[:, P-1:P+T-1] in the original module
    h_rows = h[:, P - 1:P - 1 + T, :].reshape(B * T, h.shape[-1])
    output["loss"] = fused_lmhead_ce(h_rows, params["ln_f_g"], params["ln_f_b"],
                                     params["lm_head_w"], params["lm_head_b"],
                                     total_ids, gradient_mask)
    return output

    # TODO(synk): _forward_evaluation (beam-search autoregressive generation)
    # has no clean Pallas equivalent and is not implemented here.


# ---------------------------------------------------------------------------
# Deterministic parameter construction
# ---------------------------------------------------------------------------
def make_params(key, *, enc_dim, n_embd, n_head, n_layer, n_vocab,
                click_dim, region_dim):
    keys = jax.random.split(key, 8 + 4 * n_layer)
    it = iter(range(len(keys)))

    def w(shape, scale=0.02):
        # matmul weights stored in bf16 (MXU operand dtype); f32 accumulation in-kernel
        return (scale * jax.random.normal(keys[next(it)], shape, jnp.float32)
                ).astype(jnp.bfloat16)

    def zeros(shape):
        return jnp.zeros(shape, jnp.float32)

    def ones(shape):
        return jnp.ones(shape, jnp.float32)

    layers = []
    for _ in range(n_layer):
        layers.append(dict(
            ln1_g=ones((n_embd,)), ln1_b=zeros((n_embd,)),
            w_qkv=w((n_embd, 3 * n_embd)), b_qkv=zeros((3 * n_embd,)),
            w_attn_out=w((n_embd, n_embd)), b_attn_out=zeros((n_embd,)),
            ln2_g=ones((n_embd,)), ln2_b=zeros((n_embd,)),
            w_fc=w((n_embd, 4 * n_embd)), b_fc=zeros((4 * n_embd,)),
            w_mlp_out=w((4 * n_embd, n_embd)), b_mlp_out=zeros((n_embd,)),
        ))

    return dict(
        n_head=n_head,
        scene_proj_w=w((enc_dim, n_embd)), scene_proj_b=zeros((n_embd,)),
        image_proj_w=w((n_embd, n_embd)), image_proj_b=zeros((n_embd,)),
        shape_proj_w=w((n_embd, n_embd)), shape_proj_b=zeros((n_embd,)),
        click_proj_w=w((click_dim, n_embd)), click_proj_b=zeros((n_embd,)),
        region_proj_w=w((region_dim, n_embd)), region_proj_b=zeros((n_embd,)),
        wte=0.02 * jax.random.normal(keys[next(it)], (n_vocab, n_embd), jnp.float32),
        layers=layers,
        ln_f_g=ones((n_embd,)), ln_f_b=zeros((n_embd,)),
        lm_head_w=w((n_embd, n_vocab)), lm_head_b=zeros((n_vocab,)),
    )


if __name__ == "__main__":
    # small, module-consistent shapes (D and V kept 128-aligned: TPU lane width)
    B = 2            # batch
    ENC_DIM = 16     # scene encoder dim
    D = 128          # n_embd (hidden)
    H = 4            # heads (head_dim = 32; grouped to a 128-lane block in-kernel)
    NL = 2           # decoder layers
    V = 512          # vocab size (tiled 2x in the fused LM-head/CE kernel)
    T = 8            # text sequence length (total_ids)
    TS, TI, TSH, TC, TR = 4, 2, 2, 1, 1   # scene/image/shape/click/region tokens
    CLICK_DIM, REGION_DIM = 3, 6

    root = jax.random.PRNGKey(0)
    kp, k1, k2, k3, k4, k5, k6 = jax.random.split(root, 7)

    params = make_params(kp, enc_dim=ENC_DIM, n_embd=D, n_head=H, n_layer=NL,
                         n_vocab=V, click_dim=CLICK_DIM, region_dim=REGION_DIM)

    output = dict(
        scene_features=jax.random.normal(k1, (B, TS, ENC_DIM), jnp.float32),
        image_features=jax.random.normal(k2, (B, TI, D), jnp.float32),
        shape_features=jax.random.normal(k3, (B, TSH, D), jnp.float32),
    )
    inputs = dict(
        click=jax.random.normal(k4, (B, TC, CLICK_DIM), jnp.float32),
        region=jax.random.normal(k5, (B, TR, REGION_DIM), jnp.float32),
        total_ids=jax.random.randint(k6, (B, T), 0, V, dtype=jnp.int32),
        total_mask=jnp.array([[1, 1, 1, 1, 1, 1, 1, 0],
                              [1, 1, 1, 1, 1, 1, 1, 1]], jnp.float32),
        answer_mask=jnp.array([[0, 0, 0, 0, 1, 1, 1, 0],
                               [0, 0, 0, 1, 1, 1, 1, 1]], jnp.float32),
        click_mask=jnp.array([[1.0], [0.0]], jnp.float32),
        image_mask=jnp.array([[1.0], [1.0]], jnp.float32),
        shape_mask=jnp.array([[1.0], [1.0]], jnp.float32),
        region_mask=jnp.array([[0.0], [1.0]], jnp.float32),
    )

    result = llm_backbone_forward(params, output, inputs)
    loss = jax.block_until_ready(result["loss"])
    assert np.isfinite(float(loss)), f"non-finite loss: {loss}"
    print("KERNEL_OK")
</pallas_src>

<mosaic_0001>
module attributes {stable_mosaic.version = 11 : i64} {
  func.func @_matmul_kernel(%arg0: i32, %arg1: i32, %arg2: i32, %arg3: memref<8x16xf32, #tpu.memory_space<vmem>>, %arg4: memref<16x128xbf16, #tpu.memory_space<vmem>>, %arg5: memref<1x128xf32, #tpu.memory_space<vmem>>, %arg6: memref<8x128xf32, #tpu.memory_space<vmem>>, %arg7: memref<8x128xf32, #tpu.memory_space<vmem>>) attributes {dimension_semantics = [#tpu.dimension_semantics<parallel>, #tpu.dimension_semantics<parallel>, #tpu.dimension_semantics<arbitrary>], iteration_bounds = array<i64: 1, 1, 1>, scalar_prefetch = 0 : i64, scratch_operands = 1 : i64, tpu.core_type = #tpu.core_type<tc>, window_params = [{transform_indices = @transform_0, window_bounds = array<i64: 8, 16>}, {transform_indices = @transform_1, window_bounds = array<i64: 16, 128>}, {transform_indices = @transform_2, window_bounds = array<i64: 1, 128>}, {transform_indices = @transform_3, window_bounds = array<i64: 8, 128>}]} {
    %c0_i32 = arith.constant 0 : i32
    %0 = arith.cmpi eq, %arg2, %c0_i32 : i32
    %1 = arith.extui %0 : i1 to i32
    %c0_i32_0 = arith.constant 0 : i32
    %2 = arith.cmpi ne, %1, %c0_i32_0 : i32
    scf.if %2 {
      %cst_10 = arith.constant 0.000000e+00 : f32
      %13 = vector.broadcast %cst_10 : f32 to vector<8x128xf32>
      %c0_11 = arith.constant 0 : index
      %c0_12 = arith.constant 0 : index
      %14 = vector.load %arg7[%c0_11, %c0_12] : memref<8x128xf32, #tpu.memory_space<vmem>>, vector<8x128xf32>
      tpu.vector_store %arg7[%c0_11, %c0_12], %13 {strides = array<i32>} : memref<8x128xf32, #tpu.memory_space<vmem>>, vector<8x128xf32>,
    } else {
    }
    %c0 = arith.constant 0 : index
    %c0_1 = arith.constant 0 : index
    %3 = vector.load %arg7[%c0, %c0_1] : memref<8x128xf32, #tpu.memory_space<vmem>>, vector<8x128xf32>
    %c0_2 = arith.constant 0 : index
    %c0_3 = arith.constant 0 : index
    %4 = vector.load %arg3[%c0_2, %c0_3] : memref<8x16xf32, #tpu.memory_space<vmem>>, vector<8x16xf32>
    %5 = arith.truncf %4 : vector<8x16xf32> to vector<8x16xbf16>
    %c0_4 = arith.constant 0 : index
    %c0_5 = arith.constant 0 : index
    %6 = vector.load %arg4[%c0_4, %c0_5] : memref<16x128xbf16, #tpu.memory_space<vmem>>, vector<16x128xbf16>
    %cst = arith.constant dense<0.000000e+00> : vector<8x128xf32>
    %7 = tpu.matmul %5, %6, %cst {dimension_numbers = #tpu.dot_dimension_numbers<[1], [0], [0], [1], [0, 0, 1, 1], [], []>} : vector<8x16xbf16>, vector<16x128xbf16>, vector<8x128xf32> -> vector<8x128xf32>
    %8 = arith.addf %3, %7 : vector<8x128xf32>
    %c0_6 = arith.constant 0 : index
    %c0_7 = arith.constant 0 : index
    %9 = vector.load %arg7[%c0_6, %c0_7] : memref<8x128xf32, #tpu.memory_space<vmem>>, vector<8x128xf32>
    tpu.vector_store %arg7[%c0_6, %c0_7], %8 {strides = array<i32>} : memref<8x128xf32, #tpu.memory_space<vmem>>, vector<8x128xf32>,
    %c0_i32_8 = arith.constant 0 : i32
    %10 = arith.cmpi eq, %arg2, %c0_i32_8 : i32
    %11 = arith.extui %10 : i1 to i32
    %c0_i32_9 = arith.constant 0 : i32
    %12 = arith.cmpi ne, %11, %c0_i32_9 : i32
    scf.if %12 {
      %c0_10 = arith.constant 0 : index
      %c0_11 = arith.constant 0 : index
      %13 = vector.load %arg7[%c0_10, %c0_11] : memref<8x128xf32, #tpu.memory_space<vmem>>, vector<8x128xf32>
      %c0_12 = arith.constant 0 : index
      %c0_13 = arith.constant 0 : index
      %14 = vector.load %arg5[%c0_12, %c0_13] : memref<1x128xf32, #tpu.memory_space<vmem>>, vector<1x128xf32>
      %15 = vector.broadcast %14 : vector<1x128xf32> to vector<8x128xf32>
      %16 = arith.addf %13, %15 : vector<8x128xf32>
      %c0_14 = arith.constant 0 : index
      %c0_15 = arith.constant 0 : index
      %17 = vector.load %arg6[%c0_14, %c0_15] : memref<8x128xf32, #tpu.memory_space<vmem>>, vector<8x128xf32>
      tpu.vector_store %arg6[%c0_14, %c0_15], %16 {strides = array<i32>} : memref<8x128xf32, #tpu.memory_space<vmem>>, vector<8x128xf32>,
    } else {
    }
    return
  }
  func.func @transform_0(%arg0: i32, %arg1: i32, %arg2: i32) -> (i32, i32) {
    %c0_i32 = arith.constant 0 : i32
    return %arg0, %arg2 : i32, i32
  }
  func.func @transform_1(%arg0: i32, %arg1: i32, %arg2: i32) -> (i32, i32) {
    %c0_i32 = arith.constant 0 : i32
    return %arg2, %arg1 : i32, i32
  }
  func.func @transform_2(%arg0: i32, %arg1: i32, %arg2: i32) -> (i32, i32) {
    %c0_i32 = arith.constant 0 : i32
    %c0_i32_0 = arith.constant 0 : i32
    return %c0_i32, %arg1 : i32, i32
  }
  func.func @transform_3(%arg0: i32, %arg1: i32, %arg2: i32) -> (i32, i32) {
    %c0_i32 = arith.constant 0 : i32
    return %arg0, %arg1 : i32, i32
  }
}

</mosaic_0001>

<llo_original>
// kernel: tpu_custom_call.1
$region0: #{tpu_custom_call.1}
  #allocation0 [shape = 'u32[]', space=smem, size = 0x4, offset = 0x4, fixed_abs, tag = 'smem constant byte address 0x4 - core index']
  #allocation1 [shape = 'u32[144,128]{1,0:T(1,128)}', space=vmem, size = 0x12000, scoped, tag = 'internal scratch']
  #allocation2 [shape = 'f32[8,128]{1,0:T(8,128)}', space=vmem, size = 0x1000, scoped, tag = 'scratch operand']
  %s0 = inlined_call_operand.hbm [shape: f32[8,16], index: 0, kind: input, shape index: {}]
  %s1 = inlined_call_operand.hbm [shape: bf16[16,128], index: 1, kind: input, shape index: {}]
  %s2 = inlined_call_operand.vmem [shape: f32[1,128], index: 2, kind: input, shape index: {}]
  %s3 = inlined_call_operand.hbm [shape: f32[8,128], index: 3, kind: output, shape index: {}]
  %s4 = sld [smem:[#allocation0]]
  $region38: #{tpu_custom_call.1} parent=0
    _
  %s6 = ssub.s32 1, %s4
  %s7 = scalar_select 0, %s6, %s4
  $region1: #{tpu_custom_call.1} parent=0
    #allocation3 [shape = 'u8[4096]{0}', space=vmem, size = 0x1000, scoped, tag = 'input window, operand 0, single buffered']
    #allocation4 [shape = 's32[1]{0}', space=sflag, size = 0x4, scoped, tag = 'scoped memory for tpu_custom_call.1']
    #allocation5 [shape = 's32[1]{0}', space=sflag, size = 0x4, scoped, tag = 'scoped memory for tpu_custom_call.1']
    #allocation6 [shape = 'u8[4096]{0}', space=vmem, size = 0x1000, scoped, tag = 'input window, operand 1, single buffered']
    #allocation7 [shape = 's32[1]{0}', space=sflag, size = 0x4, scoped, tag = 'scoped memory for tpu_custom_call.1']
    #allocation8 [shape = 'u8[4096]{0}', space=vmem, size = 0x1000, scoped, tag = 'output window, operand 0, single buffered']
    %8 = vsyncpa [#allocation4], 0
    %9 = vsyncpa [#allocation7], 0
    %10 = vsyncpa [#allocation5], 0
    // Predicated region
    $region2: #{tpu_custom_call.1} parent=1 // pred_check
      _
    $region3: #{tpu_custom_call.1} parent=1 // pred_check_branch
      %12 = sbr.rel (0) target = $region5
    $region4: #{tpu_custom_call.1} parent=1 // pred_region
      %s14 = ssub.s32 128, 128
      %15 = vsyncadd [#allocation4], %s14
      %s17 = sshll.u32 [#allocation3], 4
      %s18 = int_to_ptr.vmem [resolvable:$true] %s17
      %20 = dma.hbm_to_vmem [thread:$0]  %s0, 128, %s18, [#allocation4]
    $region5: #{tpu_custom_call.1} parent=1 // pred_fallthru
      _
    // Predicated region
    $region6: #{tpu_custom_call.1} parent=1 // pred_check
      _
    $region7: #{tpu_custom_call.1} parent=1 // pred_check_branch
      %22 = sbr.rel (0) target = $region9
    $region8: #{tpu_custom_call.1} parent=1 // pred_region
      %s24 = ssub.s32 128, 128
      %25 = vsyncadd [#allocation7], %s24
      %s26 = sshll.u32 [#allocation6], 4
      %s27 = int_to_ptr.vmem [resolvable:$true] %s26
      %32 = dma.hbm_to_vmem [thread:$0]  %s1, 128, %s27, [#allocation7], 64, 64, 4
    $region9: #{tpu_custom_call.1} parent=1 // pred_fallthru
      _
    // Predicated region
    $region10: #{tpu_custom_call.1} parent=1 // pred_check
      _
    $region11: #{tpu_custom_call.1} parent=1 // pred_check_branch
      %34 = sbr.rel (0) target = $region13
    $region12: #{tpu_custom_call.1} parent=1 // pred_region
      _
    $region13: #{tpu_custom_call.1} parent=1 // pred_fallthru
      _
    // Predicated region
    $region14: #{tpu_custom_call.1} parent=1 // pred_check
      _
    $region15: #{tpu_custom_call.1} parent=1 // pred_check_branch
      %36 = sbr.rel (0) target = $region17
    $region16: #{tpu_custom_call.1} parent=1 // pred_region
      %37 = dma.done [#allocation4], 128
    $region17: #{tpu_custom_call.1} parent=1 // pred_fallthru
      _
    // Predicated region
    $region18: #{tpu_custom_call.1} parent=1 // pred_check
      _
    $region19: #{tpu_custom_call.1} parent=1 // pred_check_branch
      %39 = sbr.rel (0) target = $region21
    $region20: #{tpu_custom_call.1} parent=1 // pred_region
      %40 = dma.done [#allocation7], 128
    $region21: #{tpu_custom_call.1} parent=1 // pred_fallthru
      _
    %p42 = scmp.eq.s32.totalorder 0, 0
    // Predicated region
    $region22: #{tpu_custom_call.1} parent=1 // pred_check
      %p43 = pneg %p42
    $region23: #{tpu_custom_call.1} parent=1 // pred_check_branch
      %45 = sbr.rel (%p43) target = $region25
    $region24: #{tpu_custom_call.1} parent=1 // pred_region
      %46 = vst [vmem:[#allocation2] sm:$0xff] 0.0
    $region25: #{tpu_custom_call.1} parent=1 // pred_fallthru
      _
    %v47 = vld [vmem:[#allocation2] sm:$0xff]
    %v48 = vld [vmem:[#allocation3] sm:$0xff]
    %v49 = vpack.c.bf16 %v48, %v48
    %v50 = vld [vmem:[#allocation6] sm:$0xf]
    %v51 = vld [vmem:[#allocation6 + $0x4] sm:$0xf]
    %v54 = vunpack.c.l.b16 %v50
    %v55 = vunpack.c.l.b16 %v51
    %v56 = vpack.c.b16 %v55, %v54
    %vm58 = vcmask 130048
    %v60 = vsel %vm58, %v49, 0
    %62 = vmatprep.subr.bf16.mxu0 0
    %63 = vmatpush1.bf16.msra.mxu0 0
    %64 = vmatprep.subr.bf16.mxu0 0
    %65 = vmatpush1.bf16.msra.mxu0 0
    %66 = vmatprep.subr.bf16.mxu0 0
    %67 = vmatpush1.bf16.msra.mxu0 0
    %68 = vmatprep.subr.bf16.mxu0 0
    %69 = vmatpush1.bf16.msra.mxu0 0
    %70 = vmatprep.subr.bf16.mxu0 0
    %71 = vmatpush1.bf16.msra.mxu0 0
    %72 = vmatprep.subr.bf16.mxu0 0
    %73 = vmatpush1.bf16.msra.mxu0 0
    %74 = vmatprep.subr.bf16.mxu0 0
    %75 = vmatpush1.bf16.msra.mxu0 0
    %76 = vmatprep.subr.bf16.mxu0 0
    %77 = vmatpush1.bf16.msra.mxu0 %v56
    %78 = vmatprep.subr.bf16.mxu0 0
    %79 = vmatpush2.bf16.msra.mxu0 0
    %80 = vmatprep.subr.bf16.mxu0 0
    %81 = vmatpush2.bf16.msra.mxu0 0
    %82 = vmatprep.subr.bf16.mxu0 0
    %83 = vmatpush2.bf16.msra.mxu0 0
    %84 = vmatprep.subr.bf16.mxu0 0
    %85 = vmatpush2.bf16.msra.mxu0 0
    %86 = vmatprep.subr.bf16.mxu0 0
    %87 = vmatpush2.bf16.msra.mxu0 0
    %88 = vmatprep.subr.bf16.mxu0 0
    %89 = vmatpush2.bf16.msra.mxu0 0
    %90 = vmatprep.subr.bf16.mxu0 0
    %91 = vmatpush2.bf16.msra.mxu0 0
    %92 = vmatprep.subr.bf16.mxu0 0
    %93 = vmatpush2.bf16.msra.mxu0 0
    %94 = vmatprep.mubr.bf16.mxu0 0
    %95 = vmatmul.mubr.bf16.gmra.mxu0 %v60
    %v96 = vpop.f32.mrf.mxu0
    %v97 = vadd.f32 0.0, %v96
    %v98 = vpop.f32.mrf.mxu0
    %v99 = vpop.f32.mrf.mxu0
    %v100 = vpop.f32.mrf.mxu0
    %101 = vdwg.mxu0
    %v102 = vadd.f32 %v47, %v97
    %103 = vst [vmem:[#allocation2] sm:$0xff] %v102
    // Predicated region
    $region26: #{tpu_custom_call.1} parent=1 // pred_check
      %p104 = pneg %p42
    $region27: #{tpu_custom_call.1} parent=1 // pred_check_branch
      %106 = sbr.rel (%p104) target = $region29
    $region28: #{tpu_custom_call.1} parent=1 // pred_region
      %v107 = vld [vmem:[#allocation2] sm:$0xff]
      %v108 = vld [vmem:[%s2] sm:$0x1]
      %v110 = vlaneseq
      %v111 = vshrl.u32 %v110, 7
      %v112 = vsub.s32 0, %v111
      %v113 = vrot.slane %v108, %v112
      %v115 = vadd.f32 %v107, %v113
      %116 = vst [vmem:[#allocation8] sm:$0xff] %v115
    $region29: #{tpu_custom_call.1} parent=1 // pred_fallthru
      _
    // Predicated region
    $region30: #{tpu_custom_call.1} parent=1 // pred_check
      _
    $region31: #{tpu_custom_call.1} parent=1 // pred_check_branch
      %118 = sbr.rel (0) target = $region33
    $region32: #{tpu_custom_call.1} parent=1 // pred_region
      %s120 = ssub.s32 128, 128
      %121 = vsyncadd [#allocation5], %s120
      %s123 = sshll.u32 [#allocation8], 4
      %s124 = int_to_ptr.vmem [resolvable:$true] %s123
      %126 = dma.vmem_to_hbm [thread:$0]  %s124, 128, %s3, [#allocation5]
    $region33: #{tpu_custom_call.1} parent=1 // pred_fallthru
      _
    // Predicated region
    $region34: #{tpu_custom_call.1} parent=1 // pred_check
      _
    $region35: #{tpu_custom_call.1} parent=1 // pred_check_branch
      %128 = sbr.rel (0) target = $region37
    $region36: #{tpu_custom_call.1} parent=1 // pred_region
      %129 = dma.done [#allocation5], 128
    $region37: #{tpu_custom_call.1} parent=1 // pred_fallthru
      _
    %130 = vsyncpa [#allocation4], 1
    %131 = vsyncpa [#allocation7], 1
    %132 = vsyncpa [#allocation5], 1

</llo_original>
